<compile_context>
chip_gen: v7x
topology: tpu7x:2x2x1
jax: 0.10.0
libtpu: 0.0.40
codegen_flags: <defaults>
</compile_context>

<pallas_src>
import functools

import jax
import jax.numpy as jnp
from jax.experimental import pallas as pl
from jax.experimental.pallas import tpu as pltpu

LN_EPS = 1e-5  # torch nn.LayerNorm default


# ------------------------------ in-kernel helpers ------------------------------

def _layernorm(x, g, b):
    """LayerNorm over the last dim in f32 (biased variance, eps=1e-5)."""
    mu = jnp.mean(x, axis=-1, keepdims=True)
    var = jnp.mean((x - mu) ** 2, axis=-1, keepdims=True)
    return (x - mu) * jax.lax.rsqrt(var + LN_EPS) * g + b


def _mm(a_f32, w_bf16):
    """bf16 x bf16 MXU matmul with f32 accumulation."""
    return jnp.dot(a_f32.astype(jnp.bfloat16), w_bf16,
                   preferred_element_type=jnp.float32)


# ---------------------------------- kernels ------------------------------------

def _embed_pos_kernel(x_ref, w_ref, b_ref, pos_ref, o_ref):
    # o = x @ W + b + pos      (decoder_embed fused with the pos-embed add)
    x = x_ref[0]                                          # (N, 768) f32
    o_ref[0] = _mm(x, w_ref[...]) + b_ref[...] + pos_ref[0]


def _attn_block_kernel(x_ref, ln_g_ref, ln_b_ref, wqkv_ref, bqkv_ref,
                       wproj_ref, bproj_ref, o_ref, *, heads, head_dim):
    # o = x + proj(MHA(LN1(x)))   -- one batch element per grid step.
    x = x_ref[0]                                          # (N, dim) f32
    dim = heads * head_dim
    scale = head_dim ** -0.5

    h = _layernorm(x, ln_g_ref[...], ln_b_ref[...])
    qkv = _mm(h, wqkv_ref[...]) + bqkv_ref[...]           # (N, 3*dim) f32, [q|k|v]

    wproj = wproj_ref[...]                                # (dim, dim) bf16
    y = x + bproj_ref[...]
    # Per-head attention; the output projection is decomposed as
    #   sum_h o_h @ Wproj[h*Dh:(h+1)*Dh, :]
    # which is mathematically identical to concat_h(o_h) @ Wproj and avoids a
    # lane-dimension concatenate inside the kernel.
    for hh in range(heads):
        lo = hh * head_dim
        q = qkv[:, lo:lo + head_dim]                      # (N, Dh)
        k = qkv[:, dim + lo:dim + lo + head_dim]          # (N, Dh)
        v = qkv[:, 2 * dim + lo:2 * dim + lo + head_dim]  # (N, Dh)
        s = jnp.einsum("qd,kd->qk",
                       q.astype(jnp.bfloat16), k.astype(jnp.bfloat16),
                       preferred_element_type=jnp.float32) * scale
        s = s - jnp.max(s, axis=-1, keepdims=True)
        p = jnp.exp(s)
        p = p * pl.reciprocal(jnp.sum(p, axis=-1, keepdims=True), approx=True)
        o_h = jnp.dot(p.astype(jnp.bfloat16), v.astype(jnp.bfloat16),
                      preferred_element_type=jnp.float32)  # (N, Dh)
        y = y + _mm(o_h, wproj[lo:lo + head_dim, :])
    o_ref[0] = y


def _mlp_block_kernel(x_ref, ln_g_ref, ln_b_ref, w1_ref, b1_ref,
                      w2_ref, b2_ref, o_ref):
    # o = x + fc2(GELU(fc1(LN2(x))))
    x = x_ref[0]                                          # (N, dim) f32
    h = _layernorm(x, ln_g_ref[...], ln_b_ref[...])
    h = _mm(h, w1_ref[...]) + b1_ref[...]
    h = jax.nn.gelu(h, approximate=False)                 # exact erf GELU (torch)
    o_ref[0] = x + _mm(h, w2_ref[...]) + b2_ref[...]


def _norm_pred_kernel(x_ref, g_ref, b_ref, w_ref, bb_ref, o_ref):
    # o = LN(x) @ Wpred + bpred
    h = _layernorm(x_ref[0], g_ref[...], b_ref[...])
    o_ref[0] = _mm(h, w_ref[...]) + bb_ref[...]


# ----------------------------- pallas_call wrappers -----------------------------

def _row_spec(n, d):
    # One batch element per grid step; (n, d) equal the full trailing dims.
    return pl.BlockSpec((1, n, d), lambda b: (b, 0, 0))


def _resident_spec(shape):
    # Constant index_map -> the (weight / bias / pos) block stays resident in VMEM.
    nd = len(shape)
    return pl.BlockSpec(tuple(shape), lambda b: (0,) * nd)


def _parallel_params():
    return pltpu.CompilerParams(dimension_semantics=("parallel",))


def embed_pos(x, w, b, pos):
    B, N, Din = x.shape
    dim = w.shape[1]
    cost = pl.CostEstimate(
        flops=2 * B * N * Din * dim,
        transcendentals=0,
        bytes_accessed=x.size * 4 + w.size * 2 + b.size * 4 + pos.size * 4
                       + B * N * dim * 4,
    )
    return pl.pallas_call(
        _embed_pos_kernel,
        grid=(B,),
        in_specs=[_row_spec(N, Din), _resident_spec(w.shape),
                  _resident_spec(b.shape), _resident_spec(pos.shape)],
        out_specs=_row_spec(N, dim),
        out_shape=jax.ShapeDtypeStruct((B, N, dim), jnp.float32),
        compiler_params=_parallel_params(),
        cost_estimate=cost,
    )(x, w, b, pos)


def attn_block(x, ln1, qkv, proj, heads):
    B, N, dim = x.shape
    head_dim = dim // heads
    g1, b1 = ln1
    wqkv, bqkv = qkv
    wproj, bproj = proj
    flops = B * (2 * N * dim * 3 * dim              # qkv matmul
                 + heads * 4 * N * N * head_dim     # q k^T and p v
                 + 2 * N * dim * dim)               # output projection
    cost = pl.CostEstimate(
        flops=flops,
        transcendentals=B * heads * N * N,          # softmax exp
        bytes_accessed=2 * x.size * 4 + (wqkv.size + wproj.size) * 2
                       + (bqkv.size + bproj.size + g1.size + b1.size) * 4,
    )
    return pl.pallas_call(
        functools.partial(_attn_block_kernel, heads=heads, head_dim=head_dim),
        grid=(B,),
        in_specs=[_row_spec(N, dim),
                  _resident_spec(g1.shape), _resident_spec(b1.shape),
                  _resident_spec(wqkv.shape), _resident_spec(bqkv.shape),
                  _resident_spec(wproj.shape), _resident_spec(bproj.shape)],
        out_specs=_row_spec(N, dim),
        out_shape=jax.ShapeDtypeStruct((B, N, dim), jnp.float32),
        compiler_params=_parallel_params(),
        cost_estimate=cost,
    )(x, g1, b1, wqkv, bqkv, wproj, bproj)


def mlp_block(x, ln2, fc1, fc2):
    B, N, dim = x.shape
    g2, b2 = ln2
    w1, bb1 = fc1
    w2, bb2 = fc2
    hidden = w1.shape[1]
    cost = pl.CostEstimate(
        flops=B * (2 * N * dim * hidden + 2 * N * hidden * dim),
        transcendentals=B * N * hidden,             # GELU erf
        bytes_accessed=2 * x.size * 4 + (w1.size + w2.size) * 2
                       + (bb1.size + bb2.size + g2.size + b2.size) * 4,
    )
    return pl.pallas_call(
        _mlp_block_kernel,
        grid=(B,),
        in_specs=[_row_spec(N, dim),
                  _resident_spec(g2.shape), _resident_spec(b2.shape),
                  _resident_spec(w1.shape), _resident_spec(bb1.shape),
                  _resident_spec(w2.shape), _resident_spec(bb2.shape)],
        out_specs=_row_spec(N, dim),
        out_shape=jax.ShapeDtypeStruct((B, N, dim), jnp.float32),
        compiler_params=_parallel_params(),
        cost_estimate=cost,
    )(x, g2, b2, w1, bb1, w2, bb2)


def norm_pred(x, norm, pred):
    B, N, dim = x.shape
    g, b = norm
    w, bb = pred
    out_dim = w.shape[1]
    cost = pl.CostEstimate(
        flops=2 * B * N * dim * out_dim,
        transcendentals=0,
        bytes_accessed=x.size * 4 + w.size * 2
                       + (bb.size + g.size + b.size) * 4 + B * N * out_dim * 4,
    )
    return pl.pallas_call(
        _norm_pred_kernel,
        grid=(B,),
        in_specs=[_row_spec(N, dim),
                  _resident_spec(g.shape), _resident_spec(b.shape),
                  _resident_spec(w.shape), _resident_spec(bb.shape)],
        out_specs=_row_spec(N, out_dim),
        out_shape=jax.ShapeDtypeStruct((B, N, out_dim), jnp.float32),
        compiler_params=_parallel_params(),
        cost_estimate=cost,
    )(x, g, b, w, bb)


# --------------------------------- Decoder model --------------------------------

def init_decoder_params(key, dim, depth, heads, patch_size, in_chans):
    ks = iter(jax.random.split(key, 4 + 4 * depth))
    s = 0.02

    def lin_init(k, fan_in, fan_out):
        # weights stored bf16 (MXU-native, halves HBM traffic); biases f32.
        w = (jax.random.normal(k, (fan_in, fan_out), jnp.float32) * s).astype(jnp.bfloat16)
        b = jnp.zeros((1, fan_out), jnp.float32)
        return w, b

    def ln_init():
        return (jnp.ones((1, dim), jnp.float32), jnp.zeros((1, dim), jnp.float32))

    params = {
        "dim": dim,
        "heads": heads,
        "embed": lin_init(next(ks), 768, dim),
        # torch init is zeros; use small randoms so the broadcast add is exercised.
        "pos_embed": jax.random.normal(next(ks), (1, 196, dim), jnp.float32) * s,
        "mask_token": jnp.zeros((1, 1, dim), jnp.float32),  # unused in forward
        "norm": ln_init(),
        "pred": lin_init(next(ks), dim, patch_size ** 2 * in_chans),
        "blocks": [],
    }
    hidden = 4 * dim  # timm Block default mlp_ratio = 4
    for _ in range(depth):
        params["blocks"].append({
            "ln1": ln_init(),
            "qkv": lin_init(next(ks), dim, 3 * dim),
            "proj": lin_init(next(ks), dim, dim),
            "ln2": ln_init(),
            "fc1": lin_init(next(ks), dim, hidden),
            "fc2": lin_init(next(ks), hidden, dim),
        })
    return params


def decoder_forward(params, x):
    # x: (B, N=196, 768) f32
    heads = params["heads"]
    w_e, b_e = params["embed"]
    x = embed_pos(x, w_e, b_e, params["pos_embed"])          # embed + pos
    for blk in params["blocks"]:
        x = attn_block(x, blk["ln1"], blk["qkv"], blk["proj"], heads)
        x = mlp_block(x, blk["ln2"], blk["fc1"], blk["fc2"])
    return norm_pred(x, params["norm"], params["pred"])      # norm + pred


# ------------------------------------ main ---------------------------------------

if __name__ == "__main__":
    # Small-but-consistent config: dim=64, depth=2, heads=4, patch_size=4, in_chans=3.
    # Sequence length is fixed at 196 by decoder_pos_embed; input feature dim is 768.
    dim, depth, heads, patch_size, in_chans = 64, 2, 4, 4, 3
    B, N, Din = 2, 196, 768

    key = jax.random.PRNGKey(0)
    pkey, xkey = jax.random.split(key)
    params = init_decoder_params(pkey, dim, depth, heads, patch_size, in_chans)
    x = jax.random.normal(xkey, (B, N, Din), jnp.float32)

    out = decoder_forward(params, x)
    out = jax.block_until_ready(out)
    assert out.shape == (B, N, patch_size ** 2 * in_chans), out.shape
    assert bool(jnp.all(jnp.isfinite(out)))
    print("KERNEL_OK")
</pallas_src>

<mosaic_0001>
module attributes {stable_mosaic.version = 11 : i64} {
  func.func @_embed_pos_kernel(%arg0: i32, %arg1: memref<1x196x768xf32, #tpu.memory_space<vmem>>, %arg2: memref<768x64xbf16, #tpu.memory_space<vmem>>, %arg3: memref<1x64xf32, #tpu.memory_space<vmem>>, %arg4: memref<1x196x64xf32, #tpu.memory_space<vmem>>, %arg5: memref<1x196x64xf32, #tpu.memory_space<vmem>>) attributes {dimension_semantics = [#tpu.dimension_semantics<parallel>], iteration_bounds = array<i64: 2>, scalar_prefetch = 0 : i64, scratch_operands = 0 : i64, tpu.core_type = #tpu.core_type<tc>, window_params = [{transform_indices = @transform_0, window_bounds = array<i64: 1, 196, 768>}, {pipeline_mode = #tpu.pipeline_mode<synchronous>, transform_indices = @transform_1, window_bounds = array<i64: 768, 64>}, {pipeline_mode = #tpu.pipeline_mode<synchronous>, transform_indices = @transform_2, window_bounds = array<i64: 1, 64>}, {pipeline_mode = #tpu.pipeline_mode<synchronous>, transform_indices = @transform_3, window_bounds = array<i64: 1, 196, 64>}, {transform_indices = @transform_4, window_bounds = array<i64: 1, 196, 64>}]} {
    %c0 = arith.constant 0 : index
    %c0_0 = arith.constant 0 : index
    %c0_1 = arith.constant 0 : index
    %0 = vector.load %arg1[%c0, %c0_0, %c0_1] : memref<1x196x768xf32, #tpu.memory_space<vmem>>, vector<1x196x768xf32>
    %1 = vector.shape_cast %0 : vector<1x196x768xf32> to vector<196x768xf32>
    %c0_2 = arith.constant 0 : index
    %c0_3 = arith.constant 0 : index
    %2 = vector.load %arg2[%c0_2, %c0_3] : memref<768x64xbf16, #tpu.memory_space<vmem>>, vector<768x64xbf16>
    %3 = arith.truncf %1 : vector<196x768xf32> to vector<196x768xbf16>
    %cst = arith.constant dense<0.000000e+00> : vector<196x64xf32>
    %4 = tpu.matmul %3, %2, %cst {dimension_numbers = #tpu.dot_dimension_numbers<[1], [0], [0], [1], [0, 0, 1, 1], [], []>} : vector<196x768xbf16>, vector<768x64xbf16>, vector<196x64xf32> -> vector<196x64xf32>
    %c0_4 = arith.constant 0 : index
    %c0_5 = arith.constant 0 : index
    %5 = vector.load %arg3[%c0_4, %c0_5] : memref<1x64xf32, #tpu.memory_space<vmem>>, vector<1x64xf32>
    %6 = vector.broadcast %5 : vector<1x64xf32> to vector<196x64xf32>
    %7 = arith.addf %4, %6 : vector<196x64xf32>
    %c0_6 = arith.constant 0 : index
    %c0_7 = arith.constant 0 : index
    %c0_8 = arith.constant 0 : index
    %8 = vector.load %arg4[%c0_6, %c0_7, %c0_8] : memref<1x196x64xf32, #tpu.memory_space<vmem>>, vector<1x196x64xf32>
    %9 = vector.shape_cast %8 : vector<1x196x64xf32> to vector<196x64xf32>
    %10 = arith.addf %7, %9 : vector<196x64xf32>
    %c0_9 = arith.constant 0 : index
    %c0_10 = arith.constant 0 : index
    %c0_11 = arith.constant 0 : index
    %11 = vector.load %arg5[%c0_9, %c0_10, %c0_11] : memref<1x196x64xf32, #tpu.memory_space<vmem>>, vector<1x196x64xf32>
    %12 = vector.shape_cast %11 : vector<1x196x64xf32> to vector<196x64xf32>
    %13 = vector.shape_cast %10 : vector<196x64xf32> to vector<1x196x64xf32>
    tpu.vector_store %arg5[%c0_9, %c0_10, %c0_11], %13 {strides = array<i32>} : memref<1x196x64xf32, #tpu.memory_space<vmem>>, vector<1x196x64xf32>,
    return
  }
  func.func @transform_0(%arg0: i32) -> (i32, i32, i32) {
    %c0_i32 = arith.constant 0 : i32
    %c0_i32_0 = arith.constant 0 : i32
    %c0_i32_1 = arith.constant 0 : i32
    return %arg0, %c0_i32, %c0_i32_0 : i32, i32, i32
  }
  func.func @transform_1(%arg0: i32) -> (i32, i32) {
    %c0_i32 = arith.constant 0 : i32
    %c0_i32_0 = arith.constant 0 : i32
    %c0_i32_1 = arith.constant 0 : i32
    return %c0_i32, %c0_i32_0 : i32, i32
  }
  func.func @transform_2(%arg0: i32) -> (i32, i32) {
    %c0_i32 = arith.constant 0 : i32
    %c0_i32_0 = arith.constant 0 : i32
    %c0_i32_1 = arith.constant 0 : i32
    return %c0_i32, %c0_i32_0 : i32, i32
  }
  func.func @transform_3(%arg0: i32) -> (i32, i32, i32) {
    %c0_i32 = arith.constant 0 : i32
    %c0_i32_0 = arith.constant 0 : i32
    %c0_i32_1 = arith.constant 0 : i32
    %c0_i32_2 = arith.constant 0 : i32
    return %c0_i32, %c0_i32_0, %c0_i32_1 : i32, i32, i32
  }
  func.func @transform_4(%arg0: i32) -> (i32, i32, i32) {
    %c0_i32 = arith.constant 0 : i32
    %c0_i32_0 = arith.constant 0 : i32
    %c0_i32_1 = arith.constant 0 : i32
    return %arg0, %c0_i32, %c0_i32_0 : i32, i32, i32
  }
}

</mosaic_0001>

<llo_original>
// kernel: tpu_custom_call.1
$region0: #{tpu_custom_call.1}
  #allocation0 [shape = 'u32[]', space=smem, size = 0x4, offset = 0x4, fixed_abs, tag = 'smem constant byte address 0x4 - core index']
  #allocation1 [shape = 'u32[144,128]{1,0:T(1,128)}', space=vmem, size = 0x12000, scoped, tag = 'internal scratch']
  %s0 = inlined_call_operand.vmem [shape: f32[2,196,768], index: 0, kind: input, shape index: {}]
  %s1 = inlined_call_operand.vmem [shape: bf16[768,64], index: 1, kind: input, shape index: {}]
  %s2 = inlined_call_operand.vmem [shape: f32[1,64], index: 2, kind: input, shape index: {}]
  %s3 = inlined_call_operand.vmem [shape: f32[1,196,64], index: 3, kind: input, shape index: {}]
  %s4 = inlined_call_operand.vmem [shape: f32[2,196,64], index: 4, kind: output, shape index: {}]
  %s5 = sld [smem:[#allocation0]]
  $region49: #{tpu_custom_call.1} parent=0
    _
  %s7 = ssub.s32 1, %s5
  %s8 = scalar_select 0, %s7, %s5
  loop: start=0, step=1, limit=4
  $region2: #{tpu_custom_call.1} parent=0 // loop_pre_header
    _
  $region3: #{tpu_custom_call.1} parent=0 // loop_header
    %s10 = sphi 0, %s14
    %p11 = scmp.ge.s32.totalorder %s10, 4
    %s20 = sphi 0, %s22
    %s23 = sphi 0, %s20
    %s24 = sphi 0, %s23
    %s40 = sphi 0, %s24
    %s44 = sphi 0, %s44
    %s46 = sphi 0, %s44
    %s47 = sphi 0, %s46
    %s61 = sphi 0, %s47
    %s65 = sphi 0, %s65
    %s67 = sphi 0, %s65
    %s68 = sphi 0, %s67
    %s82 = sphi 0, %s68
    %s86 = sphi 0, %s86
    %s88 = sphi 0, %s86
    %s89 = sphi 0, %s88
    %s103 = sphi 0, %s89
    %s109 = sphi 0, %s111
    %s112 = sphi 0, %s109
    %s113 = sphi 0, %s112
    %s129 = sphi 0, %s113
  $region4: #{tpu_custom_call.1} parent=0 // loop_header_branch
    %13 = sbr.rel (%p11) target = $region8
  $region5: #{tpu_custom_call.1} parent=0 // loop_body
    %s15 = ssub.s32 %s10, 1
    %s16 = ssub.s32 %s10, 2
    %s17 = sadd.s32 %s10, 1
    %s18 = ssub.s32 %s10, %s17
    %p19 = scmp.eq.s32.totalorder %s18, 0
    %s21 = sadd.s32 %s20, 1
    %s22 = scalar_select %p19, %s20, %s21
    %p25 = pneg %p19
    %p26 = scmp.eq.s32.totalorder %s10, 1
    %p27 = por %p25, %p26
    %p28 = scmp.ne.s32.totalorder %s20, %s23
    %p29 = scmp.eq.s32.totalorder %s10, 0
    %p30 = por %p28, %p29
    %p31 = scmp.ne.s32.totalorder %s20, %s23
    %p32 = scmp.eq.s32.totalorder %s15, 1
    %p33 = por %p31, %p32
    %p34 = scmp.ne.s32.totalorder %s23, %s24
    %p35 = scmp.eq.s32.totalorder %s15, 0
    %p36 = por %p34, %p35
    %p37 = scmp.ne.s32.totalorder %s23, %s24
    %p38 = scmp.eq.s32.totalorder %s16, 1
    %p39 = por %p37, %p38
    %p41 = scmp.ne.s32.totalorder %s24, %s40
    %p42 = scmp.eq.s32.totalorder %s16, 0
    %p43 = por %p41, %p42
    %s45 = sadd.s32 %s44, 1
    %p48 = scmp.eq.s32.totalorder %s10, 1
    %p49 = scmp.ne.s32.totalorder %s44, %s46
    %p50 = scmp.eq.s32.totalorder %s10, 0
    %p51 = por %p49, %p50
    %p52 = scmp.ne.s32.totalorder %s44, %s46
    %p53 = scmp.eq.s32.totalorder %s15, 1
    %p54 = por %p52, %p53
    %p55 = scmp.ne.s32.totalorder %s46, %s47
    %p56 = scmp.eq.s32.totalorder %s15, 0
    %p57 = por %p55, %p56
    %p58 = scmp.ne.s32.totalorder %s46, %s47
    %p59 = scmp.eq.s32.totalorder %s16, 1
    %p60 = por %p58, %p59
    %p62 = scmp.ne.s32.totalorder %s47, %s61
    %p63 = scmp.eq.s32.totalorder %s16, 0
    %p64 = por %p62, %p63
    %s66 = sadd.s32 %s65, 1
    %p69 = scmp.eq.s32.totalorder %s10, 1
    %p70 = scmp.ne.s32.totalorder %s65, %s67
    %p71 = scmp.eq.s32.totalorder %s10, 0
    %p72 = por %p70, %p71
    %p73 = scmp.ne.s32.totalorder %s65, %s67
    %p74 = scmp.eq.s32.totalorder %s15, 1
    %p75 = por %p73, %p74
    %p76 = scmp.ne.s32.totalorder %s67, %s68
    %p77 = scmp.eq.s32.totalorder %s15, 0
    %p78 = por %p76, %p77
    %p79 = scmp.ne.s32.totalorder %s67, %s68
    %p80 = scmp.eq.s32.totalorder %s16, 1
    %p81 = por %p79, %p80
    %p83 = scmp.ne.s32.totalorder %s68, %s82
    %p84 = scmp.eq.s32.totalorder %s16, 0
    %p85 = por %p83, %p84
    %s87 = sadd.s32 %s86, 1
    %p90 = scmp.eq.s32.totalorder %s10, 1
    %p91 = scmp.ne.s32.totalorder %s86, %s88
    %p92 = scmp.eq.s32.totalorder %s10, 0
    %p93 = por %p91, %p92
    %p94 = scmp.ne.s32.totalorder %s86, %s88
    %p95 = scmp.eq.s32.totalorder %s15, 1
    %p96 = por %p94, %p95
    %p97 = scmp.ne.s32.totalorder %s88, %s89
    %p98 = scmp.eq.s32.totalorder %s15, 0
    %p99 = por %p97, %p98
    %p100 = scmp.ne.s32.totalorder %s88, %s89
    %p101 = scmp.eq.s32.totalorder %s16, 1
    %p102 = por %p100, %p101
    %p104 = scmp.ne.s32.totalorder %s89, %s103
    %p105 = scmp.eq.s32.totalorder %s16, 0
    %p106 = por %p104, %p105
    %s107 = ssub.s32 %s10, %s17
    %p108 = scmp.eq.s32.totalorder %s107, 0
    %s110 = sadd.s32 %s109, 1
    %s111 = scalar_select %p108, %s109, %s110
    %p114 = pneg %p108
    %p115 = scmp.eq.s32.totalorder %s10, 1
    %p116 = por %p114, %p115
    %p117 = scmp.ne.s32.totalorder %s109, %s112
    %p118 = scmp.eq.s32.totalorder %s10, 0
    %p119 = por %p117, %p118
    %p120 = scmp.ne.s32.totalorder %s109, %s112
    %p121 = scmp.eq.s32.totalorder %s15, 1
    %p122 = por %p120, %p121
    %p123 = scmp.ne.s32.totalorder %s112, %s113
    %p124 = scmp.eq.s32.totalorder %s15, 0
    %p125 = por %p123, %p124
    %p126 = scmp.ne.s32.totalorder %s112, %s113
    %p127 = scmp.eq.s32.totalorder %s16, 1
    %p128 = por %p126, %p127
    %p130 = scmp.ne.s32.totalorder %s113, %s129
    %p131 = scmp.eq.s32.totalorder %s16, 0
    %p132 = por %p130, %p131
    %p133 = scmp.le.s32.totalorder 1, %s10
    %p134 = scmp.lt.s32.totalorder %s10, 3
    %p135 = pnand %p133, %p134
    %p136 = pneg %p135
    // Predicated region
    $region9: #{tpu_custom_call.1} parent=5 // pred_check
      _
    $region10: #{tpu_custom_call.1} parent=5 // pred_check_branch
      %138 = sbr.rel (%p135) target = $region12
    $region11: #{tpu_custom_call.1} parent=5 // pred_region
      %s139 = ssub.s32 %s10, 1
      // Predicated region
      $region13: #{tpu_custom_call.1} parent=11 // pred_check
        %p140 = pneg %p57
      $region14: #{tpu_custom_call.1} parent=11 // pred_check_branch
        %142 = sbr.rel (%p140) target = $region16
      $region15: #{tpu_custom_call.1} parent=11 // pred_region
        _
      $region16: #{tpu_custom_call.1} parent=11 // pred_fallthru
        _
      // Predicated region
      $region17: #{tpu_custom_call.1} parent=11 // pred_check
        %p143 = pneg %p78
      $region18: #{tpu_custom_call.1} parent=11 // pred_check_branch
        %145 = sbr.rel (%p143) target = $region20
      $region19: #{tpu_custom_call.1} parent=11 // pred_region
        _
      $region20: #{tpu_custom_call.1} parent=11 // pred_fallthru
        _
      // Predicated region
      $region21: #{tpu_custom_call.1} parent=11 // pred_check
        %p146 = pneg %p99
      $region22: #{tpu_custom_call.1} parent=11 // pred_check_branch
        %148 = sbr.rel (%p146) target = $region24
      $region23: #{tpu_custom_call.1} parent=11 // pred_region
        _
      $region24: #{tpu_custom_call.1} parent=11 // pred_fallthru
        _
    $region12: #{tpu_custom_call.1} parent=5 // pred_fallthru
      _
    %p149 = scmp.lt.s32.totalorder %s10, 2
    // Predicated region
    $region25: #{tpu_custom_call.1} parent=5 // pred_check
      %p150 = pneg %p149
    $region26: #{tpu_custom_call.1} parent=5 // pred_check_branch
      %152 = sbr.rel (%p150) target = $region28
    $region27: #{tpu_custom_call.1} parent=5 // pred_region
      // Predicated region
      $region29: #{tpu_custom_call.1} parent=27 // pred_check
        %p153 = pneg %p30
      $region30: #{tpu_custom_call.1} parent=27 // pred_check_branch
        %155 = sbr.rel (%p153) target = $region32
      $region31: #{tpu_custom_call.1} parent=27 // pred_region
        %p156 = scmp.lt.s32.totalorder %s10, 1
        %s157 = scalar_select %p156, %s10, 1
        %s158 = smul.addr %s157, 150
        %s159 = smul.addr %s158, 8
        %s160 = scalar_lea.vmem %s0, %s159
      $region32: #{tpu_custom_call.1} parent=27 // pred_fallthru
        _
    $region28: #{tpu_custom_call.1} parent=5 // pred_fallthru
      _
    %p161 = scmp.le.s32.totalorder 1, %s10
    %p162 = scmp.lt.s32.totalorder %s10, 3
    %p163 = pnand %p161, %p162
    %p164 = pneg %p163
    // Predicated region
    $region33: #{tpu_custom_call.1} parent=5 // pred_check
      _
    $region34: #{tpu_custom_call.1} parent=5 // pred_check_branch
      %166 = sbr.rel (%p163) target = $region36
    $region35: #{tpu_custom_call.1} parent=5 // pred_region
      %s167 = ssub.s32 %s10, 1
      %p168 = scmp.lt.s32.totalorder %s15, 1
      %s169 = scalar_select %p168, %s15, 1
      %s170 = smul.addr %s169, 150
      %s171 = smul.addr %s170, 8
      %s172 = scalar_lea.vmem %s0, %s171
      %p173 = pneg %p36
      %p174 = pneg %p33
      %p175 = pneg %p57
      %p176 = pneg %p54
      %p177 = pneg %p78
      %p178 = pneg %p75
      %p179 = pneg %p99
      %p180 = pneg %p96
      %p181 = pneg %p125
      %p182 = pneg %p122
      %p183 = scmp.lt.s32.totalorder %s15, 1
      %s184 = scalar_select %p183, %s15, 1
      %s185 = smul.addr %s184, 25
      %s186 = smul.addr %s185, 8
      %s187 = scalar_lea.vmem %s4, %s186
      %p188 = scmp.lt.s32.totalorder %s15, 1
      %s189 = scalar_select %p188, %s15, 1
      %s190 = smul.addr %s189, 150
      %s191 = smul.addr %s190, 8
      %s192 = scalar_lea.vmem %s0, %s191
      %p193 = scmp.lt.s32.totalorder %s15, 1
      %s194 = scalar_select %p193, %s15, 1
      %s195 = smul.addr %s194, 25
      %s196 = smul.addr %s195, 8
      %s197 = scalar_lea.vmem %s4, %s196
      %v199 = vld [vmem:[%s192] sm:$0xff]
      %v200 = vld [vmem:[%s192 + $0x8] sm:$0xff]
      %v201 = vld [vmem:[%s192 + $0x10] sm:$0xff]
      %v202 = vld [vmem:[%s192 + $0x18] sm:$0xff]
      %v203 = vld [vmem:[%s192 + $0x20] sm:$0xff]
      %v204 = vld [vmem:[%s192 + $0x28] sm:$0xff]
      %v205 = vld [vmem:[%s192 + $0x30] sm:$0xff]
      %v206 = vld [vmem:[%s192 + $0x38] sm:$0xff]
      %v207 = vld [vmem:[%s192 + $0x40] sm:$0xff]
      %v208 = vld [vmem:[%s192 + $0x48] sm:$0xff]
      %v209 = vld [vmem:[%s192 + $0x50] sm:$0xff]
      %v210 = vld [vmem:[%s192 + $0x58] sm:$0xff]
      %v211 = vld [vmem:[%s192 + $0x60] sm:$0xff]
      %v212 = vld [vmem:[%s192 + $0x68] sm:$0xff]
      %v213 = vld [vmem:[%s192 + $0x70] sm:$0xff]
      %v214 = vld [vmem:[%s192 + $0x78] sm:$0xff]
      %v215 = vld [vmem:[%s192 + $0x80] sm:$0xff]
      %v216 = vld [vmem:[%s192 + $0x88] sm:$0xff]
      %v217 = vld [vmem:[%s192 + $0x90] sm:$0xff]
      %v218 = vld [vmem:[%s192 + $0x98] sm:$0xff]
      %v219 = vld [vmem:[%s192 + $0xa0] sm:$0xff]
      %v220 = vld [vmem:[%s192 + $0xa8] sm:$0xff]
      %v221 = vld [vmem:[%s192 + $0xb0] sm:$0xff]
      %v222 = vld [vmem:[%s192 + $0xb8] sm:$0xff]
      %v223 = vld [vmem:[%s192 + $0xc0] sm:$0xff]
      %v224 = vld [vmem:[%s192 + $0xc8] sm:$0xff]
      %v225 = vld [vmem:[%s192 + $0xd0] sm:$0xff]
      %v226 = vld [vmem:[%s192 + $0xd8] sm:$0xff]
      %v227 = vld [vmem:[%s192 + $0xe0] sm:$0xff]
      %v228 = vld [vmem:[%s192 + $0xe8] sm:$0xff]
      %v229 = vld [vmem:[%s192 + $0xf0] sm:$0xff]
      %v230 = vld [vmem:[%s192 + $0xf8] sm:$0xff]
      %v231 = vld [vmem:[%s192 + $0x100] sm:$0xff]
      %v232 = vld [vmem:[%s192 + $0x108] sm:$0xff]
      %v233 = vld [vmem:[%s192 + $0x110] sm:$0xff]
      %v234 = vld [vmem:[%s192 + $0x118] sm:$0xff]
      %v235 = vld [vmem:[%s192 + $0x120] sm:$0xff]
      %v236 = vld [vmem:[%s192 + $0x128] sm:$0xff]
      %v237 = vld [vmem:[%s192 + $0x130] sm:$0xff]
      %v238 = vld [vmem:[%s192 + $0x138] sm:$0xff]
      %v239 = vld [vmem:[%s192 + $0x140] sm:$0xff]
      %v240 = vld [vmem:[%s192 + $0x148] sm:$0xff]
      %v241 = vld [vmem:[%s192 + $0x150] sm:$0xff]
      %v242 = vld [vmem:[%s192 + $0x158] sm:$0xff]
      %v243 = vld [vmem:[%s192 + $0x160] sm:$0xff]
      %v244 = vld [vmem:[%s192 + $0x168] sm:$0xff]
      %v245 = vld [vmem:[%s192 + $0x170] sm:$0xff]
      %v246 = vld [vmem:[%s192 + $0x178] sm:$0xff]
      %v247 = vld [vmem:[%s192 + $0x180] sm:$0xff]
      %v248 = vld [vmem:[%s192 + $0x188] sm:$0xff]
      %v249 = vld [vmem:[%s192 + $0x190] sm:$0xff]
      %v250 = vld [vmem:[%s192 + $0x198] sm:$0xff]
      %v251 = vld [vmem:[%s192 + $0x1a0] sm:$0xff]
      %v252 = vld [vmem:[%s192 + $0x1a8] sm:$0xff]
      %v253 = vld [vmem:[%s192 + $0x1b0] sm:$0xff]
      %v254 = vld [vmem:[%s192 + $0x1b8] sm:$0xff]
      %v255 = vld [vmem:[%s192 + $0x1c0] sm:$0xff]
      %v256 = vld [vmem:[%s192 + $0x1c8] sm:$0xff]
      %v257 = vld [vmem:[%s192 + $0x1d0] sm:$0xff]
      %v258 = vld [vmem:[%s192 + $0x1d8] sm:$0xff]
      %v259 = vld [vmem:[%s192 + $0x1e0] sm:$0xff]
      %v260 = vld [vmem:[%s192 + $0x1e8] sm:$0xff]
      %v261 = vld [vmem:[%s192 + $0x1f0] sm:$0xff]
      %v262 = vld [vmem:[%s192 + $0x1f8] sm:$0xff]
      %v263 = vld [vmem:[%s192 + $0x200] sm:$0xff]
      %v264 = vld [vmem:[%s192 + $0x208] sm:$0xff]
      %v265 = vld [vmem:[%s192 + $0x210] sm:$0xff]
      %v266 = vld [vmem:[%s192 + $0x218] sm:$0xff]
      %v267 = vld [vmem:[%s192 + $0x220] sm:$0xff]
      %v268 = vld [vmem:[%s192 + $0x228] sm:$0xff]
      %v269 = vld [vmem:[%s192 + $0x230] sm:$0xff]
      %v270 = vld [vmem:[%s192 + $0x238] sm:$0xff]
      %v271 = vld [vmem:[%s192 + $0x240] sm:$0xff]
      %v272 = vld [vmem:[%s192 + $0x248] sm:$0xff]
      %v273 = vld [vmem:[%s192 + $0x250] sm:$0xff]
      %v274 = vld [vmem:[%s192 + $0x258] sm:$0xff]
      %v275 = vld [vmem:[%s192 + $0x260] sm:$0xff]
      %v276 = vld [vmem:[%s192 + $0x268] sm:$0xff]
      %v277 = vld [vmem:[%s192 + $0x270] sm:$0xff]
      %v278 = vld [vmem:[%s192 + $0x278] sm:$0xff]
      %v279 = vld [vmem:[%s192 + $0x280] sm:$0xff]
      %v280 = vld [vmem:[%s192 + $0x288] sm:$0xff]
      %v281 = vld [vmem:[%s192 + $0x290] sm:$0xff]
      %v282 = vld [vmem:[%s192 + $0x298] sm:$0xff]
      %v283 = vld [vmem:[%s192 + $0x2a0] sm:$0xff]
      %v284 = vld [vmem:[%s192 + $0x2a8] sm:$0xff]
      %v285 = vld [vmem:[%s192 + $0x2b0] sm:$0xff]
      %v286 = vld [vmem:[%s192 + $0x2b8] sm:$0xff]
      %v287 = vld [vmem:[%s192 + $0x2c0] sm:$0xff]
      %v288 = vld [vmem:[%s192 + $0x2c8] sm:$0xff]
      %v289 = vld [vmem:[%s192 + $0x2d0] sm:$0xff]
      %v290 = vld [vmem:[%s192 + $0x2d8] sm:$0xff]
      %v291 = vld [vmem:[%s192 + $0x2e0] sm:$0xff]
      %v292 = vld [vmem:[%s192 + $0x2e8] sm:$0xff]
      %v293 = vld [vmem:[%s192 + $0x2f0] sm:$0xff]
      %v294 = vld [vmem:[%s192 + $0x2f8] sm:$0xff]
      %v295 = vld [vmem:[%s192 + $0x300] sm:$0xff]
      %v296 = vld [vmem:[%s192 + $0x308] sm:$0xff]
      %v297 = vld [vmem:[%s192 + $0x310] sm:$0xff]
      %v298 = vld [vmem:[%s192 + $0x318] sm:$0xff]
      %v299 = vld [vmem:[%s192 + $0x320] sm:$0xff]
      %v300 = vld [vmem:[%s192 + $0x328] sm:$0xff]
      %v301 = vld [vmem:[%s192 + $0x330] sm:$0xff]
      %v302 = vld [vmem:[%s192 + $0x338] sm:$0xff]
      %v303 = vld [vmem:[%s192 + $0x340] sm:$0xff]
      %v304 = vld [vmem:[%s192 + $0x348] sm:$0xff]
      %v305 = vld [vmem:[%s192 + $0x350] sm:$0xff]
      %v306 = vld [vmem:[%s192 + $0x358] sm:$0xff]
      %v307 = vld [vmem:[%s192 + $0x360] sm:$0xff]
      %v308 = vld [vmem:[%s192 + $0x368] sm:$0xff]
      %v309 = vld [vmem:[%s192 + $0x370] sm:$0xff]
      %v310 = vld [vmem:[%s192 + $0x378] sm:$0xff]
      %v311 = vld [vmem:[%s192 + $0x380] sm:$0xff]
      %v312 = vld [vmem:[%s192 + $0x388] sm:$0xff]
      %v313 = vld [vmem:[%s192 + $0x390] sm:$0xff]
      %v314 = vld [vmem:[%s192 + $0x398] sm:$0xff]
      %v315 = vld [vmem:[%s192 + $0x3a0] sm:$0xff]
      %v316 = vld [vmem:[%s192 + $0x3a8] sm:$0xff]
      %v317 = vld [vmem:[%s192 + $0x3b0] sm:$0xff]
      %v318 = vld [vmem:[%s192 + $0x3b8] sm:$0xff]
      %v319 = vld [vmem:[%s192 + $0x3c0] sm:$0xff]
      %v320 = vld [vmem:[%s192 + $0x3c8] sm:$0xff]
      %v321 = vld [vmem:[%s192 + $0x3d0] sm:$0xff]
      %v322 = vld [vmem:[%s192 + $0x3d8] sm:$0xff]
      %v323 = vld [vmem:[%s192 + $0x3e0] sm:$0xff]
      %v324 = vld [vmem:[%s192 + $0x3e8] sm:$0xff]
      %v325 = vld [vmem:[%s192 + $0x3f0] sm:$0xff]
      %v326 = vld [vmem:[%s192 + $0x3f8] sm:$0xff]
      %v327 = vld [vmem:[%s192 + $0x400] sm:$0xff]
      %v328 = vld [vmem:[%s192 + $0x408] sm:$0xff]
      %v329 = vld [vmem:[%s192 + $0x410] sm:$0xff]
      %v330 = vld [vmem:[%s192 + $0x418] sm:$0xff]
      %v331 = vld [vmem:[%s192 + $0x420] sm:$0xff]
      %v332 = vld [vmem:[%s192 + $0x428] sm:$0xff]
      %v333 = vld [vmem:[%s192 + $0x430] sm:$0xff]
      %v334 = vld [vmem:[%s192 + $0x438] sm:$0xff]
      %v335 = vld [vmem:[%s192 + $0x440] sm:$0xff]
      %v336 = vld [vmem:[%s192 + $0x448] sm:$0xff]
      %v337 = vld [vmem:[%s192 + $0x450] sm:$0xff]
      %v338 = vld [vmem:[%s192 + $0x458] sm:$0xff]
      %v339 = vld [vmem:[%s192 + $0x460] sm:$0xff]
      %v340 = vld [vmem:[%s192 + $0x468] sm:$0xff]
      %v341 = vld [vmem:[%s192 + $0x470] sm:$0xff]
      %v342 = vld [vmem:[%s192 + $0x478] sm:$0xff]
      %v343 = vld [vmem:[%s192 + $0x480] sm:$0xf]
      %v344 = vld [vmem:[%s192 + $0x488] sm:$0xf]
      %v345 = vld [vmem:[%s192 + $0x490] sm:$0xf]
      %v346 = vld [vmem:[%s192 + $0x498] sm:$0xf]
      %v347 = vld [vmem:[%s192 + $0x4a0] sm:$0xf]
      %v348 = vld [vmem:[%s192 + $0x4a8] sm:$0xf]
      %v349 = vld [vmem:[%s1] sm:$0xf]
      %v350 = vld [vmem:[%s1 + $0x4] sm:$0xf]
      %v351 = vld [vmem:[%s1 + $0x8] sm:$0xf]
      %v352 = vld [vmem:[%s1 + $0xc] sm:$0xf]
      %v353 = vld [vmem:[%s1 + $0x10] sm:$0xf]
      %v354 = vld [vmem:[%s1 + $0x14] sm:$0xf]
      %v355 = vld [vmem:[%s1 + $0x18] sm:$0xf]
      %v356 = vld [vmem:[%s1 + $0x1c] sm:$0xf]
      %v357 = vld [vmem:[%s1 + $0x20] sm:$0xf]
      %v358 = vld [vmem:[%s1 + $0x24] sm:$0xf]
      %v359 = vld [vmem:[%s1 + $0x28] sm:$0xf]
      %v360 = vld [vmem:[%s1 + $0x2c] sm:$0xf]
      %v361 = vld [vmem:[%s1 + $0x30] sm:$0xf]
      %v362 = vld [vmem:[%s1 + $0x34] sm:$0xf]
      %v363 = vld [vmem:[%s1 + $0x38] sm:$0xf]
      %v364 = vld [vmem:[%s1 + $0x3c] sm:$0xf]
      %v365 = vld [vmem:[%s1 + $0x40] sm:$0xf]
      %v366 = vld [vmem:[%s1 + $0x44] sm:$0xf]
      %v367 = vld [vmem:[%s1 + $0x48] sm:$0xf]
      %v368 = vld [vmem:[%s1 + $0x4c] sm:$0xf]
      %v369 = vld [vmem:[%s1 + $0x50] sm:$0xf]
      %v370 = vld [vmem:[%s1 + $0x54] sm:$0xf]
      %v371 = vld [vmem:[%s1 + $0x58] sm:$0xf]
      %v372 = vld [vmem:[%s1 + $0x5c] sm:$0xf]
      %v373 = vld [vmem:[%s1 + $0x60] sm:$0xf]
      %v374 = vld [vmem:[%s1 + $0x64] sm:$0xf]
      %v375 = vld [vmem:[%s1 + $0x68] sm:$0xf]
      %v376 = vld [vmem:[%s1 + $0x6c] sm:$0xf]
      %v377 = vld [vmem:[%s1 + $0x70] sm:$0xf]
      %v378 = vld [vmem:[%s1 + $0x74] sm:$0xf]
      %v379 = vld [vmem:[%s1 + $0x78] sm:$0xf]
      %v380 = vld [vmem:[%s1 + $0x7c] sm:$0xf]
      %v381 = vld [vmem:[%s1 + $0x80] sm:$0xf]
      %v382 = vld [vmem:[%s1 + $0x84] sm:$0xf]
      %v383 = vld [vmem:[%s1 + $0x88] sm:$0xf]
      %v384 = vld [vmem:[%s1 + $0x8c] sm:$0xf]
      %v385 = vld [vmem:[%s1 + $0x90] sm:$0xf]
      %v386 = vld [vmem:[%s1 + $0x94] sm:$0xf]
      %v387 = vld [vmem:[%s1 + $0x98] sm:$0xf]
      %v388 = vld [vmem:[%s1 + $0x9c] sm:$0xf]
      %v389 = vld [vmem:[%s1 + $0xa0] sm:$0xf]
      %v390 = vld [vmem:[%s1 + $0xa4] sm:$0xf]
      %v391 = vld [vmem:[%s1 + $0xa8] sm:$0xf]
      %v392 = vld [vmem:[%s1 + $0xac] sm:$0xf]
      %v393 = vld [vmem:[%s1 + $0xb0] sm:$0xf]
      %v394 = vld [vmem:[%s1 + $0xb4] sm:$0xf]
      %v395 = vld [vmem:[%s1 + $0xb8] sm:$0xf]
      %v396 = vld [vmem:[%s1 + $0xbc] sm:$0xf]
      %v397 = vld [vmem:[%s1 + $0xc0] sm:$0xf]
      %v398 = vld [vmem:[%s1 + $0xc4] sm:$0xf]
      %v399 = vld [vmem:[%s1 + $0xc8] sm:$0xf]
      %v400 = vld [vmem:[%s1 + $0xcc] sm:$0xf]
      %v401 = vld [vmem:[%s1 + $0xd0] sm:$0xf]
      %v402 = vld [vmem:[%s1 + $0xd4] sm:$0xf]
      %v403 = vld [vmem:[%s1 + $0xd8] sm:$0xf]
      %v404 = vld [vmem:[%s1 + $0xdc] sm:$0xf]
      %v405 = vld [vmem:[%s1 + $0xe0] sm:$0xf]
      %v406 = vld [vmem:[%s1 + $0xe4] sm:$0xf]
      %v407 = vld [vmem:[%s1 + $0xe8] sm:$0xf]
      %v408 = vld [vmem:[%s1 + $0xec] sm:$0xf]
      %v409 = vld [vmem:[%s1 + $0xf0] sm:$0xf]
      %v410 = vld [vmem:[%s1 + $0xf4] sm:$0xf]
      %v411 = vld [vmem:[%s1 + $0xf8] sm:$0xf]
      %v412 = vld [vmem:[%s1 + $0xfc] sm:$0xf]
      %v413 = vld [vmem:[%s1 + $0x100] sm:$0xf]
      %v414 = vld [vmem:[%s1 + $0x104] sm:$0xf]
      %v415 = vld [vmem:[%s1 + $0x108] sm:$0xf]
      %v416 = vld [vmem:[%s1 + $0x10c] sm:$0xf]
      %v417 = vld [vmem:[%s1 + $0x110] sm:$0xf]
      %v418 = vld [vmem:[%s1 + $0x114] sm:$0xf]
      %v419 = vld [vmem:[%s1 + $0x118] sm:$0xf]
      %v420 = vld [vmem:[%s1 + $0x11c] sm:$0xf]
      %v421 = vld [vmem:[%s1 + $0x120] sm:$0xf]
      %v422 = vld [vmem:[%s1 + $0x124] sm:$0xf]
      %v423 = vld [vmem:[%s1 + $0x128] sm:$0xf]
      %v424 = vld [vmem:[%s1 + $0x12c] sm:$0xf]
      %v425 = vld [vmem:[%s1 + $0x130] sm:$0xf]
      %v426 = vld [vmem:[%s1 + $0x134] sm:$0xf]
      %v427 = vld [vmem:[%s1 + $0x138] sm:$0xf]
      %v428 = vld [vmem:[%s1 + $0x13c] sm:$0xf]
      %v429 = vld [vmem:[%s1 + $0x140] sm:$0xf]
      %v430 = vld [vmem:[%s1 + $0x144] sm:$0xf]
      %v431 = vld [vmem:[%s1 + $0x148] sm:$0xf]
      %v432 = vld [vmem:[%s1 + $0x14c] sm:$0xf]
      %v433 = vld [vmem:[%s1 + $0x150] sm:$0xf]
      %v434 = vld [vmem:[%s1 + $0x154] sm:$0xf]
      %v435 = vld [vmem:[%s1 + $0x158] sm:$0xf]
      %v436 = vld [vmem:[%s1 + $0x15c] sm:$0xf]
      %v437 = vld [vmem:[%s1 + $0x160] sm:$0xf]
      %v438 = vld [vmem:[%s1 + $0x164] sm:$0xf]
      %v439 = vld [vmem:[%s1 + $0x168] sm:$0xf]
      %v440 = vld [vmem:[%s1 + $0x16c] sm:$0xf]
      %v441 = vld [vmem:[%s1 + $0x170] sm:$0xf]
      %v442 = vld [vmem:[%s1 + $0x174] sm:$0xf]
      %v443 = vld [vmem:[%s1 + $0x178] sm:$0xf]
      %v444 = vld [vmem:[%s1 + $0x17c] sm:$0xf]
      %v445 = vpack.c.bf16 %v205, %v199
      %v446 = vpack.c.bf16 %v206, %v200
      %v447 = vpack.c.bf16 %v207, %v201
      %v448 = vpack.c.bf16 %v208, %v202
      %v449 = vpack.c.bf16 %v209, %v203
      %v450 = vpack.c.bf16 %v210, %v204
      %v451 = vpack.c.bf16 %v217, %v211
      %v452 = vpack.c.bf16 %v218, %v212
      %v453 = vpack.c.bf16 %v219, %v213
      %v454 = vpack.c.bf16 %v220, %v214
      %v455 = vpack.c.bf16 %v221, %v215
      %v456 = vpack.c.bf16 %v222, %v216
      %v457 = vpack.c.bf16 %v229, %v223
      %v458 = vpack.c.bf16 %v230, %v224
      %v459 = vpack.c.bf16 %v231, %v225
      %v460 = vpack.c.bf16 %v232, %v226
      %v461 = vpack.c.bf16 %v233, %v227
      %v462 = vpack.c.bf16 %v234, %v228
      %v463 = vpack.c.bf16 %v241, %v235
      %v464 = vpack.c.bf16 %v242, %v236
      %v465 = vpack.c.bf16 %v243, %v237
      %v466 = vpack.c.bf16 %v244, %v238
      %v467 = vpack.c.bf16 %v245, %v239
      %v468 = vpack.c.bf16 %v246, %v240
      %v469 = vpack.c.bf16 %v253, %v247
      %v470 = vpack.c.bf16 %v254, %v248
      %v471 = vpack.c.bf16 %v255, %v249
      %v472 = vpack.c.bf16 %v256, %v250
      %v473 = vpack.c.bf16 %v257, %v251
      %v474 = vpack.c.bf16 %v258, %v252
      %v475 = vpack.c.bf16 %v265, %v259
      %v476 = vpack.c.bf16 %v266, %v260
      %v477 = vpack.c.bf16 %v267, %v261
      %v478 = vpack.c.bf16 %v268, %v262
      %v479 = vpack.c.bf16 %v269, %v263
      %v480 = vpack.c.bf16 %v270, %v264
      %v481 = vpack.c.bf16 %v277, %v271
      %v482 = vpack.c.bf16 %v278, %v272
      %v483 = vpack.c.bf16 %v279, %v273
      %v484 = vpack.c.bf16 %v280, %v274
      %v485 = vpack.c.bf16 %v281, %v275
      %v486 = vpack.c.bf16 %v282, %v276
      %v487 = vpack.c.bf16 %v289, %v283
      %v488 = vpack.c.bf16 %v290, %v284
      %v489 = vpack.c.bf16 %v291, %v285
      %v490 = vpack.c.bf16 %v292, %v286
      %v491 = vpack.c.bf16 %v293, %v287
      %v492 = vpack.c.bf16 %v294, %v288
      %v493 = vpack.c.bf16 %v301, %v295
      %v494 = vpack.c.bf16 %v302, %v296
      %v495 = vpack.c.bf16 %v303, %v297
      %v496 = vpack.c.bf16 %v304, %v298
      %v497 = vpack.c.bf16 %v305, %v299
      %v498 = vpack.c.bf16 %v306, %v300
      %v499 = vpack.c.bf16 %v313, %v307
      %v500 = vpack.c.bf16 %v314, %v308
      %v501 = vpack.c.bf16 %v315, %v309
      %v502 = vpack.c.bf16 %v316, %v310
      %v503 = vpack.c.bf16 %v317, %v311
      %v504 = vpack.c.bf16 %v318, %v312
      %v505 = vpack.c.bf16 %v325, %v319
      %v506 = vpack.c.bf16 %v326, %v320
      %v507 = vpack.c.bf16 %v327, %v321
      %v508 = vpack.c.bf16 %v328, %v322
      %v509 = vpack.c.bf16 %v329, %v323
      %v510 = vpack.c.bf16 %v330, %v324
      %v511 = vpack.c.bf16 %v337, %v331
      %v512 = vpack.c.bf16 %v338, %v332
      %v513 = vpack.c.bf16 %v339, %v333
      %v514 = vpack.c.bf16 %v340, %v334
      %v515 = vpack.c.bf16 %v341, %v335
      %v516 = vpack.c.bf16 %v342, %v336
      %v517 = vpack.c.bf16 %v343, %v343
      %v518 = vpack.c.bf16 %v344, %v344
      %v519 = vpack.c.bf16 %v345, %v345
      %v520 = vpack.c.bf16 %v346, %v346
      %v521 = vpack.c.bf16 %v347, %v347
      %v522 = vpack.c.bf16 %v348, %v348
      %v523 = vld [vmem:[%s2] sm:$0x1]
      %v525 = vlaneseq
      %v526 = vshrl.u32 %v525, 7
      %v527 = vsub.s32 0, %v526
      %v528 = vrot.slane %v523, %v527
      %v626 = vunpack.c.l.b16 %v349
      %v627 = vunpack.c.l.b16 %v350
      %v628 = vunpack.c.l.b16 %v351
      %v629 = vunpack.c.l.b16 %v352
      %v630 = vunpack.c.l.b16 %v353
      %v631 = vunpack.c.l.b16 %v354
      %v632 = vunpack.c.l.b16 %v355
      %v633 = vunpack.c.l.b16 %v356
      %v634 = vunpack.c.l.b16 %v357
      %v635 = vunpack.c.l.b16 %v358
      %v636 = vunpack.c.l.b16 %v359
      %v637 = vunpack.c.l.b16 %v360
      %v638 = vunpack.c.l.b16 %v361
      %v639 = vunpack.c.l.b16 %v362
      %v640 = vunpack.c.l.b16 %v363
      %v641 = vunpack.c.l.b16 %v364
      %v642 = vunpack.c.l.b16 %v365
      %v643 = vunpack.c.l.b16 %v366
      %v644 = vunpack.c.l.b16 %v367
      %v645 = vunpack.c.l.b16 %v368
      %v646 = vunpack.c.l.b16 %v369
      %v647 = vunpack.c.l.b16 %v370
      %v648 = vunpack.c.l.b16 %v371
      %v649 = vunpack.c.l.b16 %v372
      %v650 = vunpack.c.l.b16 %v373
      %v651 = vunpack.c.l.b16 %v374
      %v652 = vunpack.c.l.b16 %v375
      %v653 = vunpack.c.l.b16 %v376
      %v654 = vunpack.c.l.b16 %v377
      %v655 = vunpack.c.l.b16 %v378
      %v656 = vunpack.c.l.b16 %v379
      %v657 = vunpack.c.l.b16 %v380
      %v658 = vunpack.c.l.b16 %v381
      %v659 = vunpack.c.l.b16 %v382
      %v660 = vunpack.c.l.b16 %v383
      %v661 = vunpack.c.l.b16 %v384
      %v662 = vunpack.c.l.b16 %v385
      %v663 = vunpack.c.l.b16 %v386
      %v664 = vunpack.c.l.b16 %v387
      %v665 = vunpack.c.l.b16 %v388
      %v666 = vunpack.c.l.b16 %v389
      %v667 = vunpack.c.l.b16 %v390
      %v668 = vunpack.c.l.b16 %v391
      %v669 = vunpack.c.l.b16 %v392
      %v670 = vunpack.c.l.b16 %v393
      %v671 = vunpack.c.l.b16 %v394
      %v672 = vunpack.c.l.b16 %v395
      %v673 = vunpack.c.l.b16 %v396
      %v674 = vunpack.c.l.b16 %v397
      %v675 = vunpack.c.l.b16 %v398
      %v676 = vunpack.c.l.b16 %v399
      %v677 = vunpack.c.l.b16 %v400
      %v678 = vunpack.c.l.b16 %v401
      %v679 = vunpack.c.l.b16 %v402
      %v680 = vunpack.c.l.b16 %v403
      %v681 = vunpack.c.l.b16 %v404
      %v682 = vunpack.c.l.b16 %v405
      %v683 = vunpack.c.l.b16 %v406
      %v684 = vunpack.c.l.b16 %v407
      %v685 = vunpack.c.l.b16 %v408
      %v686 = vunpack.c.l.b16 %v409
      %v687 = vunpack.c.l.b16 %v410
      %v688 = vunpack.c.l.b16 %v411
      %v689 = vunpack.c.l.b16 %v412
      %v690 = vunpack.c.l.b16 %v413
      %v691 = vunpack.c.l.b16 %v414
      %v692 = vunpack.c.l.b16 %v415
      %v693 = vunpack.c.l.b16 %v416
      %v694 = vunpack.c.l.b16 %v417
      %v695 = vunpack.c.l.b16 %v418
      %v696 = vunpack.c.l.b16 %v419
      %v697 = vunpack.c.l.b16 %v420
      %v698 = vunpack.c.l.b16 %v421
      %v699 = vunpack.c.l.b16 %v422
      %v700 = vunpack.c.l.b16 %v423
      %v701 = vunpack.c.l.b16 %v424
      %v702 = vunpack.c.l.b16 %v425
      %v703 = vunpack.c.l.b16 %v426
      %v704 = vunpack.c.l.b16 %v427
      %v705 = vunpack.c.l.b16 %v428
      %v706 = vunpack.c.l.b16 %v429
      %v707 = vunpack.c.l.b16 %v430
      %v708 = vunpack.c.l.b16 %v431
      %v709 = vunpack.c.l.b16 %v432
      %v710 = vunpack.c.l.b16 %v433
      %v711 = vunpack.c.l.b16 %v434
      %v712 = vunpack.c.l.b16 %v435
      %v713 = vunpack.c.l.b16 %v436
      %v714 = vunpack.c.l.b16 %v437
      %v715 = vunpack.c.l.b16 %v438
      %v716 = vunpack.c.l.b16 %v439
      %v717 = vunpack.c.l.b16 %v440
      %v718 = vunpack.c.l.b16 %v441
      %v719 = vunpack.c.l.b16 %v442
      %v720 = vunpack.c.l.b16 %v443
      %v721 = vunpack.c.l.b16 %v444
      %v722 = vpack.c.b16 %v627, %v626
      %v723 = vpack.c.b16 %v629, %v628
      %v724 = vpack.c.b16 %v631, %v630
      %v725 = vpack.c.b16 %v633, %v632
      %v726 = vpack.c.b16 %v635, %v634
      %v727 = vpack.c.b16 %v637, %v636
      %v728 = vpack.c.b16 %v639, %v638
      %v729 = vpack.c.b16 %v641, %v640
      %v730 = vpack.c.b16 %v643, %v642
      %v731 = vpack.c.b16 %v645, %v644
      %v732 = vpack.c.b16 %v647, %v646
      %v733 = vpack.c.b16 %v649, %v648
      %v734 = vpack.c.b16 %v651, %v650
      %v735 = vpack.c.b16 %v653, %v652
      %v736 = vpack.c.b16 %v655, %v654
      %v737 = vpack.c.b16 %v657, %v656
      %v738 = vpack.c.b16 %v659, %v658
      %v739 = vpack.c.b16 %v661, %v660
      %v740 = vpack.c.b16 %v663, %v662
      %v741 = vpack.c.b16 %v665, %v664
      %v742 = vpack.c.b16 %v667, %v666
      %v743 = vpack.c.b16 %v669, %v668
      %v744 = vpack.c.b16 %v671, %v670
      %v745 = vpack.c.b16 %v673, %v672
      %v746 = vpack.c.b16 %v675, %v674
      %v747 = vpack.c.b16 %v677, %v676
      %v748 = vpack.c.b16 %v679, %v678
      %v749 = vpack.c.b16 %v681, %v680
      %v750 = vpack.c.b16 %v683, %v682
      %v751 = vpack.c.b16 %v685, %v684
      %v752 = vpack.c.b16 %v687, %v686
      %v753 = vpack.c.b16 %v689, %v688
      %v754 = vpack.c.b16 %v691, %v690
      %v755 = vpack.c.b16 %v693, %v692
      %v756 = vpack.c.b16 %v695, %v694
      %v757 = vpack.c.b16 %v697, %v696
      %v758 = vpack.c.b16 %v699, %v698
      %v759 = vpack.c.b16 %v701, %v700
      %v760 = vpack.c.b16 %v703, %v702
      %v761 = vpack.c.b16 %v705, %v704
      %v762 = vpack.c.b16 %v707, %v706
      %v763 = vpack.c.b16 %v709, %v708
      %v764 = vpack.c.b16 %v711, %v710
      %v765 = vpack.c.b16 %v713, %v712
      %v766 = vpack.c.b16 %v715, %v714
      %v767 = vpack.c.b16 %v717, %v716
      %v768 = vpack.c.b16 %v719, %v718
      %v769 = vpack.c.b16 %v721, %v720
      %818 = vmatprep.subr.bf16.mxu0 0
      %819 = vmatpush1.bf16.msra.mxu0 %v722
      %820 = vmatprep.subr.bf16.mxu0 0
      %821 = vmatpush1.bf16.msra.mxu0 %v723
      %822 = vmatprep.subr.bf16.mxu0 0
      %823 = vmatpush1.bf16.msra.mxu0 %v724
      %824 = vmatprep.subr.bf16.mxu0 0
      %825 = vmatpush1.bf16.msra.mxu0 %v725
      %826 = vmatprep.subr.bf16.mxu0 0
      %827 = vmatpush1.bf16.msra.mxu0 %v726
      %828 = vmatprep.subr.bf16.mxu0 0
      %829 = vmatpush1.bf16.msra.mxu0 %v727
      %830 = vmatprep.subr.bf16.mxu0 0
      %831 = vmatpush1.bf16.msra.mxu0 %v728
      %832 = vmatprep.subr.bf16.mxu0 0
      %833 = vmatpush1.bf16.msra.mxu0 %v729
      %834 = vmatprep.subr.bf16.mxu0 0
      %835 = vmatpush1.bf16.msra.mxu0 %v730
      %836 = vmatprep.subr.bf16.mxu0 0
      %837 = vmatpush1.bf16.msra.mxu0 %v731
      %838 = vmatprep.subr.bf16.mxu0 0
      %839 = vmatpush1.bf16.msra.mxu0 %v732
      %840 = vmatprep.subr.bf16.mxu0 0
      %841 = vmatpush1.bf16.msra.mxu0 %v733
      %842 = vmatprep.subr.bf16.mxu0 0
      %843 = vmatpush1.bf16.msra.mxu0 %v734
      %844 = vmatprep.subr.bf16.mxu0 0
      %845 = vmatpush1.bf16.msra.mxu0 %v735
      %846 = vmatprep.subr.bf16.mxu0 0
      %847 = vmatpush1.bf16.msra.mxu0 %v736
      %848 = vmatprep.subr.bf16.mxu0 0
      %849 = vmatpush1.bf16.msra.mxu0 %v737
      %850 = vmatprep.mubr.bf16.mxu0 %v446
      %851 = vmatmul.mubr.bf16.gmra.mrb[0].mxu0 %v445
      %v852 = vpop.f32.mrb[0].mxu0
      %v853 = vadd.f32 %v528, %v852
      %v854 = vpop.f32.mrb[0].mxu0
      %v855 = vpop.f32.mrb[0].mxu0
      %v856 = vadd.f32 %v528, %v855
      %v857 = vpop.f32.mrb[0].mxu0
      %858 = vmatprep.mubr.bf16.mxu0 %v452
      %859 = vmatmul.mubr.bf16.gmra.mrb[0].mxu0 %v451
      %v860 = vpop.f32.mrb[0].mxu0
      %v861 = vadd.f32 %v528, %v860
      %v862 = vpop.f32.mrb[0].mxu0
      %v863 = vpop.f32.mrb[0].mxu0
      %v864 = vadd.f32 %v528, %v863
      %v865 = vpop.f32.mrb[0].mxu0
      %866 = vmatprep.mubr.bf16.mxu0 %v458
      %867 = vmatmul.mubr.bf16.gmra.mrb[0].mxu0 %v457
      %v868 = vpop.f32.mrb[0].mxu0
      %v869 = vadd.f32 %v528, %v868
      %v870 = vpop.f32.mrb[0].mxu0
      %v871 = vpop.f32.mrb[0].mxu0
      %v872 = vadd.f32 %v528, %v871
      %v873 = vpop.f32.mrb[0].mxu0
      %874 = vmatprep.mubr.bf16.mxu0 %v464
      %875 = vmatmul.mubr.bf16.gmra.mrb[0].mxu0 %v463
      %v876 = vpop.f32.mrb[0].mxu0
      %v877 = vadd.f32 %v528, %v876
      %v878 = vpop.f32.mrb[0].mxu0
      %v879 = vpop.f32.mrb[0].mxu0
      %v880 = vadd.f32 %v528, %v879
      %v881 = vpop.f32.mrb[0].mxu0
      %882 = vmatprep.mubr.bf16.mxu0 %v470
      %883 = vmatmul.mubr.bf16.gmra.mrb[0].mxu0 %v469
      %v884 = vpop.f32.mrb[0].mxu0
      %v885 = vadd.f32 %v528, %v884
      %v886 = vpop.f32.mrb[0].mxu0
      %v887 = vpop.f32.mrb[0].mxu0
      %v888 = vadd.f32 %v528, %v887
      %v889 = vpop.f32.mrb[0].mxu0
      %890 = vmatprep.mubr.bf16.mxu0 %v476
      %891 = vmatmul.mubr.bf16.gmra.mrb[0].mxu0 %v475
      %v892 = vpop.f32.mrb[0].mxu0
      %v893 = vadd.f32 %v528, %v892
      %v894 = vpop.f32.mrb[0].mxu0
      %v895 = vpop.f32.mrb[0].mxu0
      %v896 = vadd.f32 %v528, %v895
      %v897 = vpop.f32.mrb[0].mxu0
      %898 = vmatprep.mubr.bf16.mxu0 %v482
      %899 = vmatmul.mubr.bf16.gmra.mrb[0].mxu0 %v481
      %v900 = vpop.f32.mrb[0].mxu0
      %v901 = vadd.f32 %v528, %v900
      %v902 = vpop.f32.mrb[0].mxu0
      %v903 = vpop.f32.mrb[0].mxu0
      %v904 = vadd.f32 %v528, %v903
      %v905 = vpop.f32.mrb[0].mxu0
      %906 = vmatprep.mubr.bf16.mxu0 %v488
      %907 = vmatmul.mubr.bf16.gmra.mrb[0].mxu0 %v487
      %v908 = vpop.f32.mrb[0].mxu0
      %v909 = vadd.f32 %v528, %v908
      %v910 = vpop.f32.mrb[0].mxu0
      %v911 = vpop.f32.mrb[0].mxu0
      %v912 = vadd.f32 %v528, %v911
      %v913 = vpop.f32.mrb[0].mxu0
      %914 = vmatprep.mubr.bf16.mxu0 %v494
      %915 = vmatmul.mubr.bf16.gmra.mrb[0].mxu0 %v493
      %v916 = vpop.f32.mrb[0].mxu0
      %v917 = vadd.f32 %v528, %v916
      %v918 = vpop.f32.mrb[0].mxu0
      %v919 = vpop.f32.mrb[0].mxu0
      %v920 = vadd.f32 %v528, %v919
      %v921 = vpop.f32.mrb[0].mxu0
      %922 = vmatprep.mubr.bf16.mxu0 %v500
      %923 = vmatmul.mubr.bf16.gmra.mrb[0].mxu0 %v499
      %v924 = vpop.f32.mrb[0].mxu0
      %v925 = vadd.f32 %v528, %v924
      %v926 = vpop.f32.mrb[0].mxu0
      %v927 = vpop.f32.mrb[0].mxu0
      %v928 = vadd.f32 %v528, %v927
      %v929 = vpop.f32.mrb[0].mxu0
      %930 = vmatprep.mubr.bf16.mxu0 %v506
      %931 = vmatmul.mubr.bf16.gmra.mrb[0].mxu0 %v505
      %v932 = vpop.f32.mrb[0].mxu0
      %v933 = vadd.f32 %v528, %v932
      %v934 = vpop.f32.mrb[0].mxu0
      %v935 = vpop.f32.mrb[0].mxu0
      %v936 = vadd.f32 %v528, %v935
      %v937 = vpop.f32.mrb[0].mxu0
      %938 = vmatprep.mubr.bf16.mxu0 %v512
      %939 = vmatmul.mubr.bf16.gmra.mrb[0].mxu0 %v511
      %v940 = vpop.f32.mrb[0].mxu0
      %v941 = vadd.f32 %v528, %v940
      %v942 = vpop.f32.mrb[0].mxu0
      %v943 = vpop.f32.mrb[0].mxu0
      %v944 = vadd.f32 %v528, %v943
      %v945 = vpop.f32.mrb[0].mxu0
      %946 = vmatprep.mubr.bf16.mxu0 %v518
      %947 = vmatmul.mubr.bf16.gmra.mrb[0].mxu0 %v517
      %v948 = vpop.f32.mrb[0].mxu0
      %v949 = vadd.f32 %v528, %v948
      %v950 = vpop.f32.mrb[0].mxu0
      %v951 = vpop.f32.mrb[0].mxu0
      %v952 = vpop.f32.mrb[0].mxu0
      %953 = vdwg.mxu0
      %954 = vmatprep.subr.bf16.mxu0 0
      %955 = vmatpush1.bf16.msra.mxu0 %v738
      %956 = vmatprep.subr.bf16.mxu0 0
      %957 = vmatpush1.bf16.msra.mxu0 %v739
      %958 = vmatprep.subr.bf16.mxu0 0
      %959 = vmatpush1.bf16.msra.mxu0 %v740
      %960 = vmatprep.subr.bf16.mxu0 0
      %961 = vmatpush1.bf16.msra.mxu0 %v741
      %962 = vmatprep.subr.bf16.mxu0 0
      %963 = vmatpush1.bf16.msra.mxu0 %v742
      %964 = vmatprep.subr.bf16.mxu0 0
      %965 = vmatpush1.bf16.msra.mxu0 %v743
      %966 = vmatprep.subr.bf16.mxu0 0
      %967 = vmatpush1.bf16.msra.mxu0 %v744
      %968 = vmatprep.subr.bf16.mxu0 0
      %969 = vmatpush1.bf16.msra.mxu0 %v745
      %970 = vmatprep.subr.bf16.mxu0 0
      %971 = vmatpush1.bf16.msra.mxu0 %v746
      %972 = vmatprep.subr.bf16.mxu0 0
      %973 = vmatpush1.bf16.msra.mxu0 %v747
      %974 = vmatprep.subr.bf16.mxu0 0
      %975 = vmatpush1.bf16.msra.mxu0 %v748
      %976 = vmatprep.subr.bf16.mxu0 0
      %977 = vmatpush1.bf16.msra.mxu0 %v749
      %978 = vmatprep.subr.bf16.mxu0 0
      %979 = vmatpush1.bf16.msra.mxu0 %v750
      %980 = vmatprep.subr.bf16.mxu0 0
      %981 = vmatpush1.bf16.msra.mxu0 %v751
      %982 = vmatprep.subr.bf16.mxu0 0
      %983 = vmatpush1.bf16.msra.mxu0 %v752
      %984 = vmatprep.subr.bf16.mxu0 0
      %985 = vmatpush1.bf16.msra.mxu0 %v753
      %986 = vmatprep.mubr.bf16.mxu0 %v448
      %987 = vmatmul.mubr.bf16.gmra.mrb[0].mxu0 %v447
      %v988 = vpop.f32.mrb[0].mxu0
      %v989 = vadd.f32 %v853, %v988
      %v990 = vpop.f32.mrb[0].mxu0
      %v991 = vpop.f32.mrb[0].mxu0
      %v992 = vadd.f32 %v856, %v991
      %v993 = vpop.f32.mrb[0].mxu0
      %994 = vmatprep.mubr.bf16.mxu0 %v454
      %995 = vmatmul.mubr.bf16.gmra.mrb[0].mxu0 %v453
      %v996 = vpop.f32.mrb[0].mxu0
      %v997 = vadd.f32 %v861, %v996
      %v998 = vpop.f32.mrb[0].mxu0
      %v999 = vpop.f32.mrb[0].mxu0
      %v1000 = vadd.f32 %v864, %v999
      %v1001 = vpop.f32.mrb[0].mxu0
      %1002 = vmatprep.mubr.bf16.mxu0 %v460
      %1003 = vmatmul.mubr.bf16.gmra.mrb[0].mxu0 %v459
      %v1004 = vpop.f32.mrb[0].mxu0
      %v1005 = vadd.f32 %v869, %v1004
      %v1006 = vpop.f32.mrb[0].mxu0
      %v1007 = vpop.f32.mrb[0].mxu0
      %v1008 = vadd.f32 %v872, %v1007
      %v1009 = vpop.f32.mrb[0].mxu0
      %1010 = vmatprep.mubr.bf16.mxu0 %v466
      %1011 = vmatmul.mubr.bf16.gmra.mrb[0].mxu0 %v465
      %v1012 = vpop.f32.mrb[0].mxu0
      %v1013 = vadd.f32 %v877, %v1012
      %v1014 = vpop.f32.mrb[0].mxu0
      %v1015 = vpop.f32.mrb[0].mxu0
      %v1016 = vadd.f32 %v880, %v1015
      %v1017 = vpop.f32.mrb[0].mxu0
      %1018 = vmatprep.mubr.bf16.mxu0 %v472
      %1019 = vmatmul.mubr.bf16.gmra.mrb[0].mxu0 %v471
      %v1020 = vpop.f32.mrb[0].mxu0
      %v1021 = vadd.f32 %v885, %v1020
      %v1022 = vpop.f32.mrb[0].mxu0
      %v1023 = vpop.f32.mrb[0].mxu0
      %v1024 = vadd.f32 %v888, %v1023
      %v1025 = vpop.f32.mrb[0].mxu0
      %1026 = vmatprep.mubr.bf16.mxu0 %v478
      %1027 = vmatmul.mubr.bf16.gmra.mrb[0].mxu0 %v477
      %v1028 = vpop.f32.mrb[0].mxu0
      %v1029 = vadd.f32 %v893, %v1028
      %v1030 = vpop.f32.mrb[0].mxu0
      %v1031 = vpop.f32.mrb[0].mxu0
      %v1032 = vadd.f32 %v896, %v1031
      %v1033 = vpop.f32.mrb[0].mxu0
      %1034 = vmatprep.mubr.bf16.mxu0 %v484
      %1035 = vmatmul.mubr.bf16.gmra.mrb[0].mxu0 %v483
      %v1036 = vpop.f32.mrb[0].mxu0
      %v1037 = vadd.f32 %v901, %v1036
      %v1038 = vpop.f32.mrb[0].mxu0
      %v1039 = vpop.f32.mrb[0].mxu0
      %v1040 = vadd.f32 %v904, %v1039
      %v1041 = vpop.f32.mrb[0].mxu0
      %1042 = vmatprep.mubr.bf16.mxu0 %v490
      %1043 = vmatmul.mubr.bf16.gmra.mrb[0].mxu0 %v489
      %v1044 = vpop.f32.mrb[0].mxu0
      %v1045 = vadd.f32 %v909, %v1044
      %v1046 = vpop.f32.mrb[0].mxu0
      %v1047 = vpop.f32.mrb[0].mxu0
      %v1048 = vadd.f32 %v912, %v1047
      %v1049 = vpop.f32.mrb[0].mxu0
      %1050 = vmatprep.mubr.bf16.mxu0 %v496
      %1051 = vmatmul.mubr.bf16.gmra.mrb[0].mxu0 %v495
      %v1052 = vpop.f32.mrb[0].mxu0
      %v1053 = vadd.f32 %v917, %v1052
      %v1054 = vpop.f32.mrb[0].mxu0
      %v1055 = vpop.f32.mrb[0].mxu0
      %v1056 = vadd.f32 %v920, %v1055
      %v1057 = vpop.f32.mrb[0].mxu0
      %1058 = vmatprep.mubr.bf16.mxu0 %v502
      %1059 = vmatmul.mubr.bf16.gmra.mrb[0].mxu0 %v501
      %v1060 = vpop.f32.mrb[0].mxu0
      %v1061 = vadd.f32 %v925, %v1060
      %v1062 = vpop.f32.mrb[0].mxu0
      %v1063 = vpop.f32.mrb[0].mxu0
      %v1064 = vadd.f32 %v928, %v1063
      %v1065 = vpop.f32.mrb[0].mxu0
      %1066 = vmatprep.mubr.bf16.mxu0 %v508
      %1067 = vmatmul.mubr.bf16.gmra.mrb[0].mxu0 %v507
      %v1068 = vpop.f32.mrb[0].mxu0
      %v1069 = vadd.f32 %v933, %v1068
      %v1070 = vpop.f32.mrb[0].mxu0
      %v1071 = vpop.f32.mrb[0].mxu0
      %v1072 = vadd.f32 %v936, %v1071
      %v1073 = vpop.f32.mrb[0].mxu0
      %1074 = vmatprep.mubr.bf16.mxu0 %v514
      %1075 = vmatmul.mubr.bf16.gmra.mrb[0].mxu0 %v513
      %v1076 = vpop.f32.mrb[0].mxu0
      %v1077 = vadd.f32 %v941, %v1076
      %v1078 = vpop.f32.mrb[0].mxu0
      %v1079 = vpop.f32.mrb[0].mxu0
      %v1080 = vadd.f32 %v944, %v1079
      %v1081 = vpop.f32.mrb[0].mxu0
      %1082 = vmatprep.mubr.bf16.mxu0 %v520
      %1083 = vmatmul.mubr.bf16.gmra.mrb[0].mxu0 %v519
      %v1084 = vpop.f32.mrb[0].mxu0
      %v1085 = vadd.f32 %v949, %v1084
      %v1086 = vpop.f32.mrb[0].mxu0
      %v1087 = vpop.f32.mrb[0].mxu0
      %v1088 = vpop.f32.mrb[0].mxu0
      %1089 = vdwg.mxu0
      %1090 = vmatprep.subr.bf16.mxu0 0
      %1091 = vmatpush1.bf16.msra.mxu0 %v754
      %1092 = vmatprep.subr.bf16.mxu0 0
      %1093 = vmatpush1.bf16.msra.mxu0 %v755
      %1094 = vmatprep.subr.bf16.mxu0 0
      %1095 = vmatpush1.bf16.msra.mxu0 %v756
      %1096 = vmatprep.subr.bf16.mxu0 0
      %1097 = vmatpush1.bf16.msra.mxu0 %v757
      %1098 = vmatprep.subr.bf16.mxu0 0
      %1099 = vmatpush1.bf16.msra.mxu0 %v758
      %1100 = vmatprep.subr.bf16.mxu0 0
      %1101 = vmatpush1.bf16.msra.mxu0 %v759
      %1102 = vmatprep.subr.bf16.mxu0 0
      %1103 = vmatpush1.bf16.msra.mxu0 %v760
      %1104 = vmatprep.subr.bf16.mxu0 0
      %1105 = vmatpush1.bf16.msra.mxu0 %v761
      %1106 = vmatprep.subr.bf16.mxu0 0
      %1107 = vmatpush1.bf16.msra.mxu0 %v762
      %1108 = vmatprep.subr.bf16.mxu0 0
      %1109 = vmatpush1.bf16.msra.mxu0 %v763
      %1110 = vmatprep.subr.bf16.mxu0 0
      %1111 = vmatpush1.bf16.msra.mxu0 %v764
      %1112 = vmatprep.subr.bf16.mxu0 0
      %1113 = vmatpush1.bf16.msra.mxu0 %v765
      %1114 = vmatprep.subr.bf16.mxu0 0
      %1115 = vmatpush1.bf16.msra.mxu0 %v766
      %1116 = vmatprep.subr.bf16.mxu0 0
      %1117 = vmatpush1.bf16.msra.mxu0 %v767
      %1118 = vmatprep.subr.bf16.mxu0 0
      %1119 = vmatpush1.bf16.msra.mxu0 %v768
      %1120 = vmatprep.subr.bf16.mxu0 0
      %1121 = vmatpush1.bf16.msra.mxu0 %v769
      %1122 = vmatprep.mubr.bf16.mxu0 %v450
      %1123 = vmatmul.mubr.bf16.gmra.mrb[0].mxu0 %v449
      %v1124 = vpop.f32.mrb[0].mxu0
      %v1125 = vadd.f32 %v989, %v1124
      %v1126 = vpop.f32.mrb[0].mxu0
      %v1127 = vpop.f32.mrb[0].mxu0
      %v1128 = vadd.f32 %v992, %v1127
      %v1129 = vpop.f32.mrb[0].mxu0
      %1130 = vmatprep.mubr.bf16.mxu0 %v456
      %1131 = vmatmul.mubr.bf16.gmra.mrb[0].mxu0 %v455
      %v1132 = vpop.f32.mrb[0].mxu0
      %v1133 = vadd.f32 %v997, %v1132
      %v1134 = vpop.f32.mrb[0].mxu0
      %v1135 = vpop.f32.mrb[0].mxu0
      %v1136 = vadd.f32 %v1000, %v1135
      %v1137 = vpop.f32.mrb[0].mxu0
      %1138 = vmatprep.mubr.bf16.mxu0 %v462
      %1139 = vmatmul.mubr.bf16.gmra.mrb[0].mxu0 %v461
      %v1140 = vpop.f32.mrb[0].mxu0
      %v1141 = vadd.f32 %v1005, %v1140
      %v1142 = vpop.f32.mrb[0].mxu0
      %v1143 = vpop.f32.mrb[0].mxu0
      %v1144 = vadd.f32 %v1008, %v1143
      %v1145 = vpop.f32.mrb[0].mxu0
      %1146 = vmatprep.mubr.bf16.mxu0 %v468
      %1147 = vmatmul.mubr.bf16.gmra.mrb[0].mxu0 %v467
      %v1148 = vpop.f32.mrb[0].mxu0
      %v1149 = vadd.f32 %v1013, %v1148
      %v1150 = vpop.f32.mrb[0].mxu0
      %v1151 = vpop.f32.mrb[0].mxu0
      %v1152 = vadd.f32 %v1016, %v1151
      %v1153 = vpop.f32.mrb[0].mxu0
      %1154 = vmatprep.mubr.bf16.mxu0 %v474
      %1155 = vmatmul.mubr.bf16.gmra.mrb[0].mxu0 %v473
      %v1156 = vpop.f32.mrb[0].mxu0
      %v1157 = vadd.f32 %v1021, %v1156
      %v1158 = vpop.f32.mrb[0].mxu0
      %v1159 = vpop.f32.mrb[0].mxu0
      %v1160 = vadd.f32 %v1024, %v1159
      %v1161 = vpop.f32.mrb[0].mxu0
      %1162 = vmatprep.mubr.bf16.mxu0 %v480
      %1163 = vmatmul.mubr.bf16.gmra.mrb[0].mxu0 %v479
      %v1164 = vpop.f32.mrb[0].mxu0
      %v1165 = vadd.f32 %v1029, %v1164
      %v1166 = vpop.f32.mrb[0].mxu0
      %v1167 = vpop.f32.mrb[0].mxu0
      %v1168 = vadd.f32 %v1032, %v1167
      %v1169 = vpop.f32.mrb[0].mxu0
      %1170 = vmatprep.mubr.bf16.mxu0 %v486
      %1171 = vmatmul.mubr.bf16.gmra.mrb[0].mxu0 %v485
      %v1172 = vpop.f32.mrb[0].mxu0
      %v1173 = vadd.f32 %v1037, %v1172
      %v1174 = vpop.f32.mrb[0].mxu0
      %v1175 = vpop.f32.mrb[0].mxu0
      %v1176 = vadd.f32 %v1040, %v1175
      %v1177 = vpop.f32.mrb[0].mxu0
      %1178 = vmatprep.mubr.bf16.mxu0 %v492
      %1179 = vmatmul.mubr.bf16.gmra.mrb[0].mxu0 %v491
      %v1180 = vpop.f32.mrb[0].mxu0
      %v1181 = vadd.f32 %v1045, %v1180
      %v1182 = vpop.f32.mrb[0].mxu0
      %v1183 = vpop.f32.mrb[0].mxu0
      %v1184 = vadd.f32 %v1048, %v1183
      %v1185 = vpop.f32.mrb[0].mxu0
      %1186 = vmatprep.mubr.bf16.mxu0 %v498
      %1187 = vmatmul.mubr.bf16.gmra.mrb[0].mxu0 %v497
      %v1188 = vpop.f32.mrb[0].mxu0
      %v1189 = vadd.f32 %v1053, %v1188
      %v1190 = vpop.f32.mrb[0].mxu0
      %v1191 = vpop.f32.mrb[0].mxu0
      %v1192 = vadd.f32 %v1056, %v1191
      %v1193 = vpop.f32.mrb[0].mxu0
      %1194 = vmatprep.mubr.bf16.mxu0 %v504
      %1195 = vmatmul.mubr.bf16.gmra.mrb[0].mxu0 %v503
      %v1196 = vpop.f32.mrb[0].mxu0
      %v1197 = vadd.f32 %v1061, %v1196
      %v1198 = vpop.f32.mrb[0].mxu0
      %v1199 = vpop.f32.mrb[0].mxu0
      %v1200 = vadd.f32 %v1064, %v1199
      %v1201 = vpop.f32.mrb[0].mxu0
      %1202 = vmatprep.mubr.bf16.mxu0 %v510
      %1203 = vmatmul.mubr.bf16.gmra.mrb[0].mxu0 %v509
      %v1204 = vpop.f32.mrb[0].mxu0
      %v1205 = vadd.f32 %v1069, %v1204
      %v1206 = vpop.f32.mrb[0].mxu0
      %v1207 = vpop.f32.mrb[0].mxu0
      %v1208 = vadd.f32 %v1072, %v1207
      %v1209 = vpop.f32.mrb[0].mxu0
      %1210 = vmatprep.mubr.bf16.mxu0 %v516
      %1211 = vmatmul.mubr.bf16.gmra.mrb[0].mxu0 %v515
      %v1212 = vpop.f32.mrb[0].mxu0
      %v1213 = vadd.f32 %v1077, %v1212
      %v1214 = vpop.f32.mrb[0].mxu0
      %v1215 = vpop.f32.mrb[0].mxu0
      %v1216 = vadd.f32 %v1080, %v1215
      %v1217 = vpop.f32.mrb[0].mxu0
      %1218 = vmatprep.mubr.bf16.mxu0 %v522
      %1219 = vmatmul.mubr.bf16.gmra.mrb[0].mxu0 %v521
      %v1220 = vpop.f32.mrb[0].mxu0
      %v1221 = vadd.f32 %v1085, %v1220
      %v1222 = vpop.f32.mrb[0].mxu0
      %v1223 = vpop.f32.mrb[0].mxu0
      %v1224 = vpop.f32.mrb[0].mxu0
      %1225 = vdwg.mxu0
      %v1226 = vld [vmem:[%s3] sm:$0xff]
      %v1227 = vld [vmem:[%s3 + $0x8] sm:$0xff]
      %v1228 = vld [vmem:[%s3 + $0x10] sm:$0xff]
      %v1229 = vld [vmem:[%s3 + $0x18] sm:$0xff]
      %v1230 = vld [vmem:[%s3 + $0x20] sm:$0xff]
      %v1231 = vld [vmem:[%s3 + $0x28] sm:$0xff]
      %v1232 = vld [vmem:[%s3 + $0x30] sm:$0xff]
      %v1233 = vld [vmem:[%s3 + $0x38] sm:$0xff]
      %v1234 = vld [vmem:[%s3 + $0x40] sm:$0xff]
      %v1235 = vld [vmem:[%s3 + $0x48] sm:$0xff]
      %v1236 = vld [vmem:[%s3 + $0x50] sm:$0xff]
      %v1237 = vld [vmem:[%s3 + $0x58] sm:$0xff]
      %v1238 = vld [vmem:[%s3 + $0x60] sm:$0xff]
      %v1239 = vld [vmem:[%s3 + $0x68] sm:$0xff]
      %v1240 = vld [vmem:[%s3 + $0x70] sm:$0xff]
      %v1241 = vld [vmem:[%s3 + $0x78] sm:$0xff]
      %v1242 = vld [vmem:[%s3 + $0x80] sm:$0xff]
      %v1243 = vld [vmem:[%s3 + $0x88] sm:$0xff]
      %v1244 = vld [vmem:[%s3 + $0x90] sm:$0xff]
      %v1245 = vld [vmem:[%s3 + $0x98] sm:$0xff]
      %v1246 = vld [vmem:[%s3 + $0xa0] sm:$0xff]
      %v1247 = vld [vmem:[%s3 + $0xa8] sm:$0xff]
      %v1248 = vld [vmem:[%s3 + $0xb0] sm:$0xff]
      %v1249 = vld [vmem:[%s3 + $0xb8] sm:$0xff]
      %v1250 = vld [vmem:[%s3 + $0xc0] sm:$0xf]
      %v1251 = vadd.f32 %v1125, %v1226
      %v1252 = vadd.f32 %v1128, %v1227
      %v1253 = vadd.f32 %v1133, %v1228
      %v1254 = vadd.f32 %v1136, %v1229
      %v1255 = vadd.f32 %v1141, %v1230
      %v1256 = vadd.f32 %v1144, %v1231
      %v1257 = vadd.f32 %v1149, %v1232
      %v1258 = vadd.f32 %v1152, %v1233
      %v1259 = vadd.f32 %v1157, %v1234
      %v1260 = vadd.f32 %v1160, %v1235
      %v1261 = vadd.f32 %v1165, %v1236
      %v1262 = vadd.f32 %v1168, %v1237
      %v1263 = vadd.f32 %v1173, %v1238
      %v1264 = vadd.f32 %v1176, %v1239
      %v1265 = vadd.f32 %v1181, %v1240
      %v1266 = vadd.f32 %v1184, %v1241
      %v1267 = vadd.f32 %v1189, %v1242
      %v1268 = vadd.f32 %v1192, %v1243
      %v1269 = vadd.f32 %v1197, %v1244
      %v1270 = vadd.f32 %v1200, %v1245
      %v1271 = vadd.f32 %v1205, %v1246
      %v1272 = vadd.f32 %v1208, %v1247
      %v1273 = vadd.f32 %v1213, %v1248
      %v1274 = vadd.f32 %v1216, %v1249
      %v1275 = vadd.f32 %v1221, %v1250
      %vm1276 = vcmask 523264
      %1277 = vst.msk [vmem:[%s197] sm:$0xff] %vm1276, %v1251
      %1278 = vst.msk [vmem:[%s197 + $0x8] sm:$0xff] %vm1276, %v1252
      %1279 = vst.msk [vmem:[%s197 + $0x10] sm:$0xff] %vm1276, %v1253
      %1280 = vst.msk [vmem:[%s197 + $0x18] sm:$0xff] %vm1276, %v1254
      %1281 = vst.msk [vmem:[%s197 + $0x20] sm:$0xff] %vm1276, %v1255
      %1282 = vst.msk [vmem:[%s197 + $0x28] sm:$0xff] %vm1276, %v1256
      %1283 = vst.msk [vmem:[%s197 + $0x30] sm:$0xff] %vm1276, %v1257
      %1284 = vst.msk [vmem:[%s197 + $0x38] sm:$0xff] %vm1276, %v1258
      %1285 = vst.msk [vmem:[%s197 + $0x40] sm:$0xff] %vm1276, %v1259
      %1286 = vst.msk [vmem:[%s197 + $0x48] sm:$0xff] %vm1276, %v1260
      %1287 = vst.msk [vmem:[%s197 + $0x50] sm:$0xff] %vm1276, %v1261
      %1288 = vst.msk [vmem:[%s197 + $0x58] sm:$0xff] %vm1276, %v1262
      %1289 = vst.msk [vmem:[%s197 + $0x60] sm:$0xff] %vm1276, %v1263
      %1290 = vst.msk [vmem:[%s197 + $0x68] sm:$0xff] %vm1276, %v1264
      %1291 = vst.msk [vmem:[%s197 + $0x70] sm:$0xff] %vm1276, %v1265
      %1292 = vst.msk [vmem:[%s197 + $0x78] sm:$0xff] %vm1276, %v1266
      %1293 = vst.msk [vmem:[%s197 + $0x80] sm:$0xff] %vm1276, %v1267
      %1294 = vst.msk [vmem:[%s197 + $0x88] sm:$0xff] %vm1276, %v1268
      %1295 = vst.msk [vmem:[%s197 + $0x90] sm:$0xff] %vm1276, %v1269
      %1296 = vst.msk [vmem:[%s197 + $0x98] sm:$0xff] %vm1276, %v1270
      %1297 = vst.msk [vmem:[%s197 + $0xa0] sm:$0xff] %vm1276, %v1271
      %1298 = vst.msk [vmem:[%s197 + $0xa8] sm:$0xff] %vm1276, %v1272
      %1299 = vst.msk [vmem:[%s197 + $0xb0] sm:$0xff] %vm1276, %v1273
      %1300 = vst.msk [vmem:[%s197 + $0xb8] sm:$0xff] %vm1276, %v1274
      %vm1301 = vcmask 519168
      %1302 = vst.msk [vmem:[%s197 + $0xc0] sm:$0xf] %vm1301, %v1275
      %p1303 = scmp.lt.s32.totalorder %s15, 1
      %s1304 = scalar_select %p1303, %s15, 1
      %s1305 = smul.addr %s1304, 25
      %s1306 = smul.addr %s1305, 8
      %s1307 = scalar_lea.vmem %s4, %s1306
      // Predicated region
      $region37: #{tpu_custom_call.1} parent=35 // pred_check
        %p1308 = pneg %p122
      $region38: #{tpu_custom_call.1} parent=35 // pred_check_branch
        %1310 = sbr.rel (%p1308) target = $region40
      $region39: #{tpu_custom_call.1} parent=35 // pred_region
        _
      $region40: #{tpu_custom_call.1} parent=35 // pred_fallthru
        _
    $region36: #{tpu_custom_call.1} parent=5 // pred_fallthru
      _
    %p1311 = scmp.le.s32.totalorder 2, %s10
    // Predicated region
    $region41: #{tpu_custom_call.1} parent=5 // pred_check
      %p1312 = pneg %p1311
    $region42: #{tpu_custom_call.1} parent=5 // pred_check_branch
      %1314 = sbr.rel (%p1312) target = $region44
    $region43: #{tpu_custom_call.1} parent=5 // pred_region
      %s1315 = ssub.s32 %s10, 2
      // Predicated region
      $region45: #{tpu_custom_call.1} parent=43 // pred_check
        %p1316 = pneg %p128
      $region46: #{tpu_custom_call.1} parent=43 // pred_check_branch
        %1318 = sbr.rel (%p1316) target = $region48
      $region47: #{tpu_custom_call.1} parent=43 // pred_region
        %p1319 = scmp.lt.s32.totalorder %s16, 1
        %s1320 = scalar_select %p1319, %s16, 1
        %s1321 = smul.addr %s1320, 25
        %s1322 = smul.addr %s1321, 8
        %s1323 = scalar_lea.vmem %s4, %s1322
      $region48: #{tpu_custom_call.1} parent=43 // pred_fallthru
        _
    $region44: #{tpu_custom_call.1} parent=5 // pred_fallthru
      _
  $region6: #{tpu_custom_call.1} parent=0 // loop_footer
    %s14 = sadd.s32 1, %s10
  $region7: #{tpu_custom_call.1} parent=0 // loop_footer_branch
    %9 = sbr.rel target = $region3
  $region8: #{tpu_custom_call.1} parent=0 // loop_exit
    _

</llo_original>
